<compile_context>
chip_gen: v7x
topology: tpu7x:2x2x1
jax: 0.10.0
libtpu: 0.0.40
codegen_flags: <defaults>
</compile_context>

<pallas_src>
import math

import jax
import jax.numpy as jnp
from jax.experimental import pallas as pl
from jax.experimental.pallas import tpu as pltpu


def make_sinusoidal_encoding(max_len: int, embed_size: int,
                             dtype=jnp.float32) -> jnp.ndarray:
    """Deterministic parameter setup (glue, plain JAX) -- mirrors __init__.

    Generate the table directly in the compute dtype so the forward pass never
    pays a per-call convert."""
    assert embed_size % 2 == 0, "sinusoidal table requires an even embed_size"
    position = jnp.arange(0, max_len, dtype=jnp.float32)[:, None]            # (L, 1)
    div_term = jnp.exp(
        jnp.arange(0, embed_size, 2, dtype=jnp.float32)
        * -(math.log(10000.0) / embed_size)
    )                                                                         # (E/2,)
    angles = position * div_term                                              # (L, E/2)
    sin = jnp.sin(angles)
    cos = jnp.cos(angles)
    # interleave: even columns <- sin, odd columns <- cos
    encoding = jnp.stack([sin, cos], axis=-1).reshape(max_len, embed_size)    # (L, E)
    return encoding[None, :, :].astype(dtype)                                 # (1, L, E)


def _add_pe_kernel(x_ref, pe_ref, o_ref):
    # Elementwise hot path: broadcasted add of the positional encoding.
    # x_ref/o_ref: (1, TL, E); pe_ref: (TL, E) -> broadcasts over the batch dim.
    o_ref[...] = (x_ref[...] + pe_ref[...]).astype(o_ref.dtype)


def _sublane_multiple(dtype) -> int:
    # f32 -> 8, bf16/f16 -> 16, int8/fp8 -> 32 (second-to-last dim quantum).
    return {4: 8, 2: 16, 1: 32}.get(jnp.dtype(dtype).itemsize, 8)


def _pick_seq_tile(L: int, E: int, dtype, *, target_block_bytes: int) -> int:
    """Largest TL that (a) is a multiple of the sublane quantum and (b) keeps a
    (TL, E) block near the byte target.  If that covers the whole sequence we
    return L (a full-array block is always layout-legal, even when L is not a
    multiple of the sublane quantum).  No exact-divisor requirement: the grid
    uses pl.cdiv and Pallas masks the ragged final tile."""
    sub = _sublane_multiple(dtype)
    itemsize = jnp.dtype(dtype).itemsize
    rows = (target_block_bytes // max(1, E * itemsize)) // sub * sub
    rows = max(sub, rows)
    if rows >= L:
        return L
    return rows


def positional_encoding_forward(x: jnp.ndarray, encoding: jnp.ndarray, *,
                                target_block_bytes: int = 4 << 20) -> jnp.ndarray:
    """x: (B, L, E), encoding: (1, L, E) or (L, E) -> (B, L, E)."""
    B, L, E = x.shape
    assert encoding.shape[-2:] == (L, E)

    # Table is ideally already stored in the compute dtype (see
    # make_sinusoidal_encoding); cast only if the caller did not.
    pe = encoding.reshape(L, E)
    if pe.dtype != x.dtype:
        pe = pe.astype(x.dtype)

    TL = _pick_seq_tile(L, E, x.dtype, target_block_bytes=target_block_bytes)
    num_l_tiles = pl.cdiv(L, TL)

    if num_l_tiles >= 2:
        # Sequence-tiled path: l leading ("parallel", shardable across v7x's two
        # TensorCores), batch innermost ("arbitrary") so the pe block index is
        # unchanged across consecutive steps -> no per-batch re-fetch.
        grid = (num_l_tiles, B)
        x_map = lambda l, b: (b, l, 0)
        pe_map = lambda l, b: (l, 0)
        o_map = lambda l, b: (b, l, 0)
        sem = ("parallel", "arbitrary")
    else:
        # Whole sequence fits a single block: iterate batch only; the single pe
        # tile stays resident across all steps.
        grid = (B,)
        x_map = lambda b: (b, 0, 0)
        pe_map = lambda b: (0, 0)
        o_map = lambda b: (b, 0, 0)
        sem = ("parallel",)

    return pl.pallas_call(
        _add_pe_kernel,
        out_shape=jax.ShapeDtypeStruct((B, L, E), x.dtype),
        grid=grid,
        in_specs=[
            pl.BlockSpec((1, TL, E), x_map),
            pl.BlockSpec((TL, E), pe_map),
        ],
        out_specs=pl.BlockSpec((1, TL, E), o_map),
        compiler_params=pltpu.CompilerParams(
            dimension_semantics=sem,
            # 3 arrays x 2 buffers x ~4 MiB blocks ~ 24 MiB: above v5e's 16 MiB
            # default scoped limit, comfortably inside v7x's 64 MiB physical.
            vmem_limit_bytes=40 << 20,
        ),
    )(x, pe)


if __name__ == "__main__":
    # --- Toy shapes from the PyTorch module (E=4 is lane-sparse; the whole
    #     sequence fits one block -> grid=(B,)). ---
    embed_size = 4
    max_len = 10
    batch = 2

    key = jax.random.PRNGKey(0)
    x = jax.random.normal(key, (batch, max_len, embed_size), dtype=jnp.float32)
    encoding = make_sinusoidal_encoding(max_len, embed_size, dtype=jnp.float32)

    ref = x + encoding
    out = jax.block_until_ready(positional_encoding_forward(x, encoding))
    assert out.shape == (batch, max_len, embed_size)
    assert jnp.allclose(out, ref, atol=1e-6), "mismatch vs reference (toy shape)"

    # --- Lane-dense bf16 shape, ragged sequence length, small byte target to
    #     force the sequence-tiled (num_l_tiles, B) grid with a masked final
    #     tile (L=1000, TL=256 -> cdiv grid of 4 with a 232-row remainder). ---
    B2, L2, E2 = 2, 1000, 128
    x2 = jax.random.normal(jax.random.PRNGKey(1), (B2, L2, E2),
                           dtype=jnp.float32).astype(jnp.bfloat16)
    enc2 = make_sinusoidal_encoding(L2, E2, dtype=jnp.bfloat16)   # table in compute dtype
    ref2 = x2 + enc2
    out2 = jax.block_until_ready(
        positional_encoding_forward(x2, enc2, target_block_bytes=64 << 10))
    assert out2.shape == (B2, L2, E2) and out2.dtype == jnp.bfloat16
    assert jnp.allclose(out2.astype(jnp.float32), ref2.astype(jnp.float32),
                        atol=1e-2), "mismatch vs reference (tiled bf16 shape)"

    print("KERNEL_OK")
</pallas_src>

<mosaic_0001>
module attributes {stable_mosaic.version = 11 : i64} {
  func.func @_add_pe_kernel(%arg0: i32, %arg1: memref<1x10x4xf32, #tpu.memory_space<vmem>>, %arg2: memref<10x4xf32, #tpu.memory_space<vmem>>, %arg3: memref<1x10x4xf32, #tpu.memory_space<vmem>>) attributes {dimension_semantics = [#tpu.dimension_semantics<parallel>], iteration_bounds = array<i64: 2>, scalar_prefetch = 0 : i64, scratch_operands = 0 : i64, tpu.core_type = #tpu.core_type<tc>, window_params = [{transform_indices = @transform_0, window_bounds = array<i64: 1, 10, 4>}, {pipeline_mode = #tpu.pipeline_mode<synchronous>, transform_indices = @transform_1, window_bounds = array<i64: 10, 4>}, {transform_indices = @transform_2, window_bounds = array<i64: 1, 10, 4>}]} {
    %c0 = arith.constant 0 : index
    %c0_0 = arith.constant 0 : index
    %c0_1 = arith.constant 0 : index
    %0 = vector.load %arg1[%c0, %c0_0, %c0_1] : memref<1x10x4xf32, #tpu.memory_space<vmem>>, vector<1x10x4xf32>
    %c0_2 = arith.constant 0 : index
    %c0_3 = arith.constant 0 : index
    %1 = vector.load %arg2[%c0_2, %c0_3] : memref<10x4xf32, #tpu.memory_space<vmem>>, vector<10x4xf32>
    %2 = vector.shape_cast %1 : vector<10x4xf32> to vector<1x10x4xf32>
    %3 = arith.addf %0, %2 : vector<1x10x4xf32>
    %c0_4 = arith.constant 0 : index
    %c0_5 = arith.constant 0 : index
    %c0_6 = arith.constant 0 : index
    %4 = vector.load %arg3[%c0_4, %c0_5, %c0_6] : memref<1x10x4xf32, #tpu.memory_space<vmem>>, vector<1x10x4xf32>
    tpu.vector_store %arg3[%c0_4, %c0_5, %c0_6], %3 {strides = array<i32>} : memref<1x10x4xf32, #tpu.memory_space<vmem>>, vector<1x10x4xf32>,
    return
  }
  func.func @transform_0(%arg0: i32) -> (i32, i32, i32) {
    %c0_i32 = arith.constant 0 : i32
    %c0_i32_0 = arith.constant 0 : i32
    %c0_i32_1 = arith.constant 0 : i32
    return %arg0, %c0_i32, %c0_i32_0 : i32, i32, i32
  }
  func.func @transform_1(%arg0: i32) -> (i32, i32) {
    %c0_i32 = arith.constant 0 : i32
    %c0_i32_0 = arith.constant 0 : i32
    %c0_i32_1 = arith.constant 0 : i32
    return %c0_i32, %c0_i32_0 : i32, i32
  }
  func.func @transform_2(%arg0: i32) -> (i32, i32, i32) {
    %c0_i32 = arith.constant 0 : i32
    %c0_i32_0 = arith.constant 0 : i32
    %c0_i32_1 = arith.constant 0 : i32
    return %arg0, %c0_i32, %c0_i32_0 : i32, i32, i32
  }
}

</mosaic_0001>

<llo_original>
// kernel: tpu_custom_call.1
$region0: #{tpu_custom_call.1}
  #allocation0 [shape = 'u32[]', space=smem, size = 0x4, offset = 0x4, fixed_abs, tag = 'smem constant byte address 0x4 - core index']
  #allocation1 [shape = 'u32[144,128]{1,0:T(1,128)}', space=vmem, size = 0x12000, scoped, tag = 'internal scratch']
  %s0 = inlined_call_operand.vmem [shape: f32[2,10,4], index: 0, kind: input, shape index: {}]
  %s1 = inlined_call_operand.vmem [shape: f32[10,4], index: 1, kind: input, shape index: {}]
  %s2 = inlined_call_operand.vmem [shape: f32[2,10,4], index: 2, kind: output, shape index: {}]
  %s3 = sld [smem:[#allocation0]]
  $region41: #{tpu_custom_call.1} parent=0
    _
  %s5 = ssub.s32 1, %s3
  %s6 = scalar_select 0, %s5, %s3
  loop: start=0, step=1, limit=4
  $region2: #{tpu_custom_call.1} parent=0 // loop_pre_header
    _
  $region3: #{tpu_custom_call.1} parent=0 // loop_header
    %s8 = sphi 0, %s12
    %p9 = scmp.ge.s32.totalorder %s8, 4
    %s18 = sphi 0, %s20
    %s21 = sphi 0, %s18
    %s22 = sphi 0, %s21
    %s38 = sphi 0, %s22
    %s42 = sphi 0, %s42
    %s44 = sphi 0, %s42
    %s45 = sphi 0, %s44
    %s59 = sphi 0, %s45
    %s65 = sphi 0, %s67
    %s68 = sphi 0, %s65
    %s69 = sphi 0, %s68
    %s85 = sphi 0, %s69
  $region4: #{tpu_custom_call.1} parent=0 // loop_header_branch
    %11 = sbr.rel (%p9) target = $region8
  $region5: #{tpu_custom_call.1} parent=0 // loop_body
    %s13 = ssub.s32 %s8, 1
    %s14 = ssub.s32 %s8, 2
    %s15 = sadd.s32 %s8, 1
    %s16 = ssub.s32 %s8, %s15
    %p17 = scmp.eq.s32.totalorder %s16, 0
    %s19 = sadd.s32 %s18, 1
    %s20 = scalar_select %p17, %s18, %s19
    %p23 = pneg %p17
    %p24 = scmp.eq.s32.totalorder %s8, 1
    %p25 = por %p23, %p24
    %p26 = scmp.ne.s32.totalorder %s18, %s21
    %p27 = scmp.eq.s32.totalorder %s8, 0
    %p28 = por %p26, %p27
    %p29 = scmp.ne.s32.totalorder %s18, %s21
    %p30 = scmp.eq.s32.totalorder %s13, 1
    %p31 = por %p29, %p30
    %p32 = scmp.ne.s32.totalorder %s21, %s22
    %p33 = scmp.eq.s32.totalorder %s13, 0
    %p34 = por %p32, %p33
    %p35 = scmp.ne.s32.totalorder %s21, %s22
    %p36 = scmp.eq.s32.totalorder %s14, 1
    %p37 = por %p35, %p36
    %p39 = scmp.ne.s32.totalorder %s22, %s38
    %p40 = scmp.eq.s32.totalorder %s14, 0
    %p41 = por %p39, %p40
    %s43 = sadd.s32 %s42, 1
    %p46 = scmp.eq.s32.totalorder %s8, 1
    %p47 = scmp.ne.s32.totalorder %s42, %s44
    %p48 = scmp.eq.s32.totalorder %s8, 0
    %p49 = por %p47, %p48
    %p50 = scmp.ne.s32.totalorder %s42, %s44
    %p51 = scmp.eq.s32.totalorder %s13, 1
    %p52 = por %p50, %p51
    %p53 = scmp.ne.s32.totalorder %s44, %s45
    %p54 = scmp.eq.s32.totalorder %s13, 0
    %p55 = por %p53, %p54
    %p56 = scmp.ne.s32.totalorder %s44, %s45
    %p57 = scmp.eq.s32.totalorder %s14, 1
    %p58 = por %p56, %p57
    %p60 = scmp.ne.s32.totalorder %s45, %s59
    %p61 = scmp.eq.s32.totalorder %s14, 0
    %p62 = por %p60, %p61
    %s63 = ssub.s32 %s8, %s15
    %p64 = scmp.eq.s32.totalorder %s63, 0
    %s66 = sadd.s32 %s65, 1
    %s67 = scalar_select %p64, %s65, %s66
    %p70 = pneg %p64
    %p71 = scmp.eq.s32.totalorder %s8, 1
    %p72 = por %p70, %p71
    %p73 = scmp.ne.s32.totalorder %s65, %s68
    %p74 = scmp.eq.s32.totalorder %s8, 0
    %p75 = por %p73, %p74
    %p76 = scmp.ne.s32.totalorder %s65, %s68
    %p77 = scmp.eq.s32.totalorder %s13, 1
    %p78 = por %p76, %p77
    %p79 = scmp.ne.s32.totalorder %s68, %s69
    %p80 = scmp.eq.s32.totalorder %s13, 0
    %p81 = por %p79, %p80
    %p82 = scmp.ne.s32.totalorder %s68, %s69
    %p83 = scmp.eq.s32.totalorder %s14, 1
    %p84 = por %p82, %p83
    %p86 = scmp.ne.s32.totalorder %s69, %s85
    %p87 = scmp.eq.s32.totalorder %s14, 0
    %p88 = por %p86, %p87
    %p89 = scmp.le.s32.totalorder 1, %s8
    %p90 = scmp.lt.s32.totalorder %s8, 3
    %p91 = pnand %p89, %p90
    %p92 = pneg %p91
    // Predicated region
    $region9: #{tpu_custom_call.1} parent=5 // pred_check
      _
    $region10: #{tpu_custom_call.1} parent=5 // pred_check_branch
      %94 = sbr.rel (%p91) target = $region12
    $region11: #{tpu_custom_call.1} parent=5 // pred_region
      %s95 = ssub.s32 %s8, 1
      // Predicated region
      $region13: #{tpu_custom_call.1} parent=11 // pred_check
        %p96 = pneg %p55
      $region14: #{tpu_custom_call.1} parent=11 // pred_check_branch
        %98 = sbr.rel (%p96) target = $region16
      $region15: #{tpu_custom_call.1} parent=11 // pred_region
        _
      $region16: #{tpu_custom_call.1} parent=11 // pred_fallthru
        _
    $region12: #{tpu_custom_call.1} parent=5 // pred_fallthru
      _
    %p99 = scmp.lt.s32.totalorder %s8, 2
    // Predicated region
    $region17: #{tpu_custom_call.1} parent=5 // pred_check
      %p100 = pneg %p99
    $region18: #{tpu_custom_call.1} parent=5 // pred_check_branch
      %102 = sbr.rel (%p100) target = $region20
    $region19: #{tpu_custom_call.1} parent=5 // pred_region
      // Predicated region
      $region21: #{tpu_custom_call.1} parent=19 // pred_check
        %p103 = pneg %p28
      $region22: #{tpu_custom_call.1} parent=19 // pred_check_branch
        %105 = sbr.rel (%p103) target = $region24
      $region23: #{tpu_custom_call.1} parent=19 // pred_region
        %p106 = scmp.lt.s32.totalorder %s8, 1
        %s107 = scalar_select %p106, %s8, 1
        %s108 = smul.addr %s107, 2
        %s109 = smul.addr %s108, 8
        %s110 = scalar_lea.vmem %s0, %s109
      $region24: #{tpu_custom_call.1} parent=19 // pred_fallthru
        _
    $region20: #{tpu_custom_call.1} parent=5 // pred_fallthru
      _
    %p111 = scmp.le.s32.totalorder 1, %s8
    %p112 = scmp.lt.s32.totalorder %s8, 3
    %p113 = pnand %p111, %p112
    %p114 = pneg %p113
    // Predicated region
    $region25: #{tpu_custom_call.1} parent=5 // pred_check
      _
    $region26: #{tpu_custom_call.1} parent=5 // pred_check_branch
      %116 = sbr.rel (%p113) target = $region28
    $region27: #{tpu_custom_call.1} parent=5 // pred_region
      %s117 = ssub.s32 %s8, 1
      %p118 = scmp.lt.s32.totalorder %s13, 1
      %s119 = scalar_select %p118, %s13, 1
      %s120 = smul.addr %s119, 2
      %s121 = smul.addr %s120, 8
      %s122 = scalar_lea.vmem %s0, %s121
      %p123 = pneg %p34
      %p124 = pneg %p31
      %p125 = pneg %p55
      %p126 = pneg %p52
      %p127 = pneg %p81
      %p128 = pneg %p78
      %p129 = scmp.lt.s32.totalorder %s13, 1
      %s130 = scalar_select %p129, %s13, 1
      %s131 = smul.addr %s130, 2
      %s132 = smul.addr %s131, 8
      %s133 = scalar_lea.vmem %s2, %s132
      %p134 = scmp.lt.s32.totalorder %s13, 1
      %s135 = scalar_select %p134, %s13, 1
      %s136 = smul.addr %s135, 2
      %s137 = smul.addr %s136, 8
      %s138 = scalar_lea.vmem %s0, %s137
      %p139 = scmp.lt.s32.totalorder %s13, 1
      %s140 = scalar_select %p139, %s13, 1
      %s141 = smul.addr %s140, 2
      %s142 = smul.addr %s141, 8
      %s143 = scalar_lea.vmem %s2, %s142
      %v144 = vld [vmem:[%s138] sm:$0xff]
      %v145 = vld [vmem:[%s138 + $0x8] sm:$0x3]
      %v146 = vld [vmem:[%s1] sm:$0xff]
      %v147 = vld [vmem:[%s1 + $0x8] sm:$0x3]
      %v148 = vadd.f32 %v144, %v146
      %v149 = vadd.f32 %v145, %v147
      %vm150 = vcmask 31744
      %151 = vst.msk [vmem:[%s143] sm:$0xff] %vm150, %v148
      %vm152 = vcmask 25600
      %153 = vst.msk [vmem:[%s143 + $0x8] sm:$0x3] %vm152, %v149
      %p154 = scmp.lt.s32.totalorder %s13, 1
      %s155 = scalar_select %p154, %s13, 1
      %s156 = smul.addr %s155, 2
      %s157 = smul.addr %s156, 8
      %s158 = scalar_lea.vmem %s2, %s157
      // Predicated region
      $region29: #{tpu_custom_call.1} parent=27 // pred_check
        %p159 = pneg %p78
      $region30: #{tpu_custom_call.1} parent=27 // pred_check_branch
        %161 = sbr.rel (%p159) target = $region32
      $region31: #{tpu_custom_call.1} parent=27 // pred_region
        _
      $region32: #{tpu_custom_call.1} parent=27 // pred_fallthru
        _
    $region28: #{tpu_custom_call.1} parent=5 // pred_fallthru
      _
    %p162 = scmp.le.s32.totalorder 2, %s8
    // Predicated region
    $region33: #{tpu_custom_call.1} parent=5 // pred_check
      %p163 = pneg %p162
    $region34: #{tpu_custom_call.1} parent=5 // pred_check_branch
      %165 = sbr.rel (%p163) target = $region36
    $region35: #{tpu_custom_call.1} parent=5 // pred_region
      %s166 = ssub.s32 %s8, 2
      // Predicated region
      $region37: #{tpu_custom_call.1} parent=35 // pred_check
        %p167 = pneg %p84
      $region38: #{tpu_custom_call.1} parent=35 // pred_check_branch
        %169 = sbr.rel (%p167) target = $region40
      $region39: #{tpu_custom_call.1} parent=35 // pred_region
        %p170 = scmp.lt.s32.totalorder %s14, 1
        %s171 = scalar_select %p170, %s14, 1
        %s172 = smul.addr %s171, 2
        %s173 = smul.addr %s172, 8
        %s174 = scalar_lea.vmem %s2, %s173
      $region40: #{tpu_custom_call.1} parent=35 // pred_fallthru
        _
    $region36: #{tpu_custom_call.1} parent=5 // pred_fallthru
      _
  $region6: #{tpu_custom_call.1} parent=0 // loop_footer
    %s12 = sadd.s32 1, %s8
  $region7: #{tpu_custom_call.1} parent=0 // loop_footer_branch
    %7 = sbr.rel target = $region3
  $region8: #{tpu_custom_call.1} parent=0 // loop_exit
    _

</llo_original>
